<compile_context>
chip_gen: v5e
topology: v5e:2x2
jax: 0.10.0
libtpu: 0.0.40
codegen_flags: <defaults>
</compile_context>

<pallas_src>
import functools

import jax
import jax.numpy as jnp
from jax.experimental import pallas as pl
from jax.experimental.pallas import tpu as pltpu


def _round_up(x, m):
    return (x + m - 1) // m * m


def _head_kernel(x_ref, w_ref, b_ref, out_ref):
    # x_ref: (tb, C, HW) -- channels on sublanes, spatial on lanes.
    # Global average pool == last-axis reduce (XLU; that slot is idle here).
    # Accumulate in f32 without materializing a full-tile upcast; the 1/HW
    # factor is pre-folded into w_ref by the wrapper, so a plain sum suffices.
    pooled = jnp.sum(x_ref[...], axis=-1, dtype=jnp.float32)          # (tb, C)

    # Fused [ori || pos] head: one lane-dense padded matmul on the MXU.
    y = jnp.dot(pooled.astype(w_ref.dtype), w_ref[...],
                preferred_element_type=jnp.float32)                   # (tb, Np)
    out_ref[...] = (y + b_ref[...].astype(jnp.float32)).astype(out_ref.dtype)


@functools.partial(jax.jit, static_argnames=("batch_tile", "vmem_budget_bytes"))
def ursonet_head_forward(x_nchw, w_pos, b_pos, w_ori, b_ori, *,
                         batch_tile=256, vmem_budget_bytes=16 * 1024 * 1024):
    """x_nchw: (B, C, H, W). w_*: (C, out). b_*: (1, out). Returns (ori, pos)."""
    B, C, H, W = x_nchw.shape
    HW = H * W
    n_pos = w_pos.shape[1]
    n_ori = w_ori.shape[1]
    n_out = n_ori + n_pos
    n_pad = _round_up(n_out, 128)

    # Contiguous view only -- no transpose, no batch pad (no extra HBM passes).
    x_bchw = x_nchw.reshape(B, C, HW)

    # Batch-tile selection:
    #  * multiple of 8 (sublane rule for the output block),
    #  * no larger than round_up(B, 8) (don't over-allocate for tiny B),
    #  * double-buffered x tile stays within the VMEM budget (32 MiB scoped
    #    default on v7x/v6e; headroom left for weights / output / f32 temps).
    itemsize = jnp.dtype(x_nchw.dtype).itemsize
    bytes_per_row = C * HW * itemsize
    tb_vmem = max(8, (vmem_budget_bytes // (2 * bytes_per_row)) // 8 * 8)
    tb = max(8, min(_round_up(batch_tile, 8), _round_up(B, 8), tb_vmem))

    num_blocks = pl.cdiv(B, tb)
    b_alloc = num_blocks * tb        # whole-block output allocation (tiny pad)

    # Fuse the two heads; fold the avg-pool's 1/HW into the weights; zero-pad
    # the N axis to a lane-dense multiple of 128.
    w = jnp.concatenate([w_ori, w_pos], axis=1) * (1.0 / HW)          # (C, n_out)
    w = jnp.pad(w, ((0, 0), (0, n_pad - n_out)))                      # (C, Np)
    b = jnp.pad(jnp.concatenate([b_ori, b_pos], axis=1),
                ((0, 0), (0, n_pad - n_out)))                         # (1, Np)

    cost = pl.CostEstimate(
        flops=2 * B * C * n_pad + B * C * HW,
        transcendentals=0,
        bytes_accessed=(B * HW * C * itemsize
                        + (C + 1) * n_pad * 4
                        + b_alloc * n_pad * 4),
    )

    out = pl.pallas_call(
        _head_kernel,
        out_shape=jax.ShapeDtypeStruct((b_alloc, n_pad), jnp.float32),
        grid_spec=pltpu.PrefetchScalarGridSpec(
            num_scalar_prefetch=0,
            grid=(num_blocks,),
            in_specs=[
                # x tile per batch block; last two dims are the full (C, HW)
                # extents so the (8,128) tiling rule is satisfied for any C/HW.
                pl.BlockSpec((tb, C, HW), lambda i: (i, 0, 0)),
                pl.BlockSpec((C, n_pad), lambda i: (0, 0)),   # fused W (resident)
                pl.BlockSpec((1, n_pad), lambda i: (0, 0)),   # fused bias (resident)
            ],
            out_specs=pl.BlockSpec((tb, n_pad), lambda i: (i, 0)),
        ),
        compiler_params=pltpu.CompilerParams(
            dimension_semantics=("parallel",),
        ),
        cost_estimate=cost,
    )(x_bchw, w, b)

    ori = out[:B, :n_ori]
    pos = out[:B, n_ori:n_out]
    return ori, pos


def _reference(x_nchw, w_pos, b_pos, w_ori, b_ori):
    pooled = jnp.mean(x_nchw.astype(jnp.float32), axis=(2, 3))
    pos = pooled @ w_pos + b_pos
    ori = pooled @ w_ori + b_ori
    return ori, pos


if __name__ == "__main__":
    # Small shapes consistent with the module's forward:
    #   n_feature_maps=128, n_ori_outputs=64, n_pos_outputs=3,
    #   pool_kernel=(8, 8) matching the input spatial size.
    B, C, H, W = 2, 128, 8, 8
    N_ORI, N_POS = 64, 3

    key = jax.random.PRNGKey(0)
    kx, kwp, kbp, kwo, kbo = jax.random.split(key, 5)

    x = jax.random.normal(kx, (B, C, H, W), dtype=jnp.float32)
    # Linear weights stored transposed as (in_features, out_features).
    w_pos = jax.random.normal(kwp, (C, N_POS), dtype=jnp.float32) * 0.05
    b_pos = jax.random.normal(kbp, (1, N_POS), dtype=jnp.float32) * 0.05
    w_ori = jax.random.normal(kwo, (C, N_ORI), dtype=jnp.float32) * 0.05
    b_ori = jax.random.normal(kbo, (1, N_ORI), dtype=jnp.float32) * 0.05

    ori, pos = ursonet_head_forward(x, w_pos, b_pos, w_ori, b_ori)
    jax.block_until_ready((ori, pos))

    ori_ref, pos_ref = _reference(x, w_pos, b_pos, w_ori, b_ori)
    assert ori.shape == (B, N_ORI) and pos.shape == (B, N_POS)
    assert jnp.allclose(ori, ori_ref, atol=1e-4, rtol=1e-4)
    assert jnp.allclose(pos, pos_ref, atol=1e-4, rtol=1e-4)

    print("KERNEL_OK")
</pallas_src>

<mosaic_0001>
module attributes {stable_mosaic.version = 11 : i64} {
  func.func @_head_kernel(%arg0: i32, %arg1: memref<8x128x64xf32, #tpu.memory_space<vmem>>, %arg2: memref<128x128xf32, #tpu.memory_space<vmem>>, %arg3: memref<1x128xf32, #tpu.memory_space<vmem>>, %arg4: memref<8x128xf32, #tpu.memory_space<vmem>>) attributes {dimension_semantics = [#tpu.dimension_semantics<parallel>], iteration_bounds = array<i64: 1>, scalar_prefetch = 0 : i64, scratch_operands = 0 : i64, tpu.core_type = #tpu.core_type<tc>, window_params = [{transform_indices = @transform_0, window_bounds = array<i64: 8, 128, 64>}, {pipeline_mode = #tpu.pipeline_mode<synchronous>, transform_indices = @transform_1, window_bounds = array<i64: 128, 128>}, {pipeline_mode = #tpu.pipeline_mode<synchronous>, transform_indices = @transform_2, window_bounds = array<i64: 1, 128>}, {transform_indices = @transform_3, window_bounds = array<i64: 8, 128>}]} {
    %c0 = arith.constant 0 : index
    %c0_0 = arith.constant 0 : index
    %c0_1 = arith.constant 0 : index
    %0 = vector.load %arg1[%c0, %c0_0, %c0_1] : memref<8x128x64xf32, #tpu.memory_space<vmem>>, vector<8x128x64xf32>
    %cst = arith.constant dense<0.000000e+00> : vector<8x128xf32>
    %1 = vector.multi_reduction <add>, %0, %cst [2] : vector<8x128x64xf32> to vector<8x128xf32>
    %c0_2 = arith.constant 0 : index
    %c0_3 = arith.constant 0 : index
    %2 = vector.load %arg2[%c0_2, %c0_3] : memref<128x128xf32, #tpu.memory_space<vmem>>, vector<128x128xf32>
    %cst_4 = arith.constant dense<0.000000e+00> : vector<8x128xf32>
    %3 = tpu.matmul %1, %2, %cst_4 {dimension_numbers = #tpu.dot_dimension_numbers<[1], [0], [0], [1], [0, 0, 1, 1], [], []>} : vector<8x128xf32>, vector<128x128xf32>, vector<8x128xf32> -> vector<8x128xf32>
    %c0_5 = arith.constant 0 : index
    %c0_6 = arith.constant 0 : index
    %4 = vector.load %arg3[%c0_5, %c0_6] : memref<1x128xf32, #tpu.memory_space<vmem>>, vector<1x128xf32>
    %5 = vector.broadcast %4 : vector<1x128xf32> to vector<8x128xf32>
    %6 = arith.addf %3, %5 : vector<8x128xf32>
    %c0_7 = arith.constant 0 : index
    %c0_8 = arith.constant 0 : index
    %7 = vector.load %arg4[%c0_7, %c0_8] : memref<8x128xf32, #tpu.memory_space<vmem>>, vector<8x128xf32>
    tpu.vector_store %arg4[%c0_7, %c0_8], %6 {strides = array<i32>} : memref<8x128xf32, #tpu.memory_space<vmem>>, vector<8x128xf32>,
    return
  }
  func.func @transform_0(%arg0: i32) -> (i32, i32, i32) {
    %c0_i32 = arith.constant 0 : i32
    %c0_i32_0 = arith.constant 0 : i32
    %c0_i32_1 = arith.constant 0 : i32
    return %arg0, %c0_i32, %c0_i32_0 : i32, i32, i32
  }
  func.func @transform_1(%arg0: i32) -> (i32, i32) {
    %c0_i32 = arith.constant 0 : i32
    %c0_i32_0 = arith.constant 0 : i32
    %c0_i32_1 = arith.constant 0 : i32
    return %c0_i32, %c0_i32_0 : i32, i32
  }
  func.func @transform_2(%arg0: i32) -> (i32, i32) {
    %c0_i32 = arith.constant 0 : i32
    %c0_i32_0 = arith.constant 0 : i32
    %c0_i32_1 = arith.constant 0 : i32
    return %c0_i32, %c0_i32_0 : i32, i32
  }
  func.func @transform_3(%arg0: i32) -> (i32, i32) {
    %c0_i32 = arith.constant 0 : i32
    %c0_i32_0 = arith.constant 0 : i32
    return %arg0, %c0_i32 : i32, i32
  }
}

</mosaic_0001>

<llo_original>
// kernel: ursonet_head_forward.1
$region0: #{ursonet_head_forward.1}
  #allocation0 [shape = 'u32[]', space=smem, size = 0x4, offset = 0x4, fixed_abs, tag = 'smem constant byte address 0x4 - core index']
  #allocation1 [shape = 'u32[72,128]{1,0:T(1,128)}', space=vmem, size = 0x9000, scoped, tag = 'internal scratch']
  %s0 = inlined_call_operand.vmem [shape: f32[2,128,64], index: 0, kind: input, shape index: {}]
  %s1 = inlined_call_operand.vmem [shape: f32[128,128], index: 1, kind: input, shape index: {}]
  %s2 = inlined_call_operand.vmem [shape: f32[1,128], index: 2, kind: input, shape index: {}]
  %s3 = inlined_call_operand.vmem [shape: f32[8,128], index: 3, kind: output, shape index: {}]
  %s4 = sld [smem:[#allocation0]]
  $region22: #{ursonet_head_forward.1} parent=0
    _
  %s6 = ssub.s32 1, %s4
  %s7 = scalar_select 0, %s6, %s4
  // Predicated region
  $region2: #{ursonet_head_forward.1} parent=0 // pred_check
    _
  $region3: #{ursonet_head_forward.1} parent=0 // pred_check_branch
    %9 = sbr.rel (0) target = $region5
  $region4: #{ursonet_head_forward.1} parent=0 // pred_region
    _
  $region5: #{ursonet_head_forward.1} parent=0 // pred_fallthru
    _
  // Predicated region
  $region6: #{ursonet_head_forward.1} parent=0 // pred_check
    _
  $region7: #{ursonet_head_forward.1} parent=0 // pred_check_branch
    %11 = sbr.rel (0) target = $region9
  $region8: #{ursonet_head_forward.1} parent=0 // pred_region
    _
  $region9: #{ursonet_head_forward.1} parent=0 // pred_fallthru
    _
  // Predicated region
  $region10: #{ursonet_head_forward.1} parent=0 // pred_check
    _
  $region11: #{ursonet_head_forward.1} parent=0 // pred_check_branch
    %13 = sbr.rel (0) target = $region13
  $region12: #{ursonet_head_forward.1} parent=0 // pred_region
    _
  $region13: #{ursonet_head_forward.1} parent=0 // pred_fallthru
    _
  %v14 = vld [vmem:[%s0] sm:$0xff]
  %v15 = vld [vmem:[%s0 + $0x8] sm:$0xff]
  %v16 = vld [vmem:[%s0 + $0x10] sm:$0xff]
  %v17 = vld [vmem:[%s0 + $0x18] sm:$0xff]
  %v18 = vld [vmem:[%s0 + $0x20] sm:$0xff]
  %v19 = vld [vmem:[%s0 + $0x28] sm:$0xff]
  %v20 = vld [vmem:[%s0 + $0x30] sm:$0xff]
  %v21 = vld [vmem:[%s0 + $0x38] sm:$0xff]
  %v22 = vld [vmem:[%s0 + $0x40] sm:$0xff]
  %v23 = vld [vmem:[%s0 + $0x48] sm:$0xff]
  %v24 = vld [vmem:[%s0 + $0x50] sm:$0xff]
  %v25 = vld [vmem:[%s0 + $0x58] sm:$0xff]
  %v26 = vld [vmem:[%s0 + $0x60] sm:$0xff]
  %v27 = vld [vmem:[%s0 + $0x68] sm:$0xff]
  %v28 = vld [vmem:[%s0 + $0x70] sm:$0xff]
  %v29 = vld [vmem:[%s0 + $0x78] sm:$0xff]
  %v30 = vld [vmem:[%s0 + $0x80] sm:$0xff]
  %v31 = vld [vmem:[%s0 + $0x88] sm:$0xff]
  %v32 = vld [vmem:[%s0 + $0x90] sm:$0xff]
  %v33 = vld [vmem:[%s0 + $0x98] sm:$0xff]
  %v34 = vld [vmem:[%s0 + $0xa0] sm:$0xff]
  %v35 = vld [vmem:[%s0 + $0xa8] sm:$0xff]
  %v36 = vld [vmem:[%s0 + $0xb0] sm:$0xff]
  %v37 = vld [vmem:[%s0 + $0xb8] sm:$0xff]
  %v38 = vld [vmem:[%s0 + $0xc0] sm:$0xff]
  %v39 = vld [vmem:[%s0 + $0xc8] sm:$0xff]
  %v40 = vld [vmem:[%s0 + $0xd0] sm:$0xff]
  %v41 = vld [vmem:[%s0 + $0xd8] sm:$0xff]
  %v42 = vld [vmem:[%s0 + $0xe0] sm:$0xff]
  %v43 = vld [vmem:[%s0 + $0xe8] sm:$0xff]
  %v44 = vld [vmem:[%s0 + $0xf0] sm:$0xff]
  %v45 = vld [vmem:[%s0 + $0xf8] sm:$0xff]
  %v46 = vld [vmem:[%s0 + $0x100] sm:$0xff]
  %v47 = vld [vmem:[%s0 + $0x108] sm:$0xff]
  %v48 = vld [vmem:[%s0 + $0x110] sm:$0xff]
  %v49 = vld [vmem:[%s0 + $0x118] sm:$0xff]
  %v50 = vld [vmem:[%s0 + $0x120] sm:$0xff]
  %v51 = vld [vmem:[%s0 + $0x128] sm:$0xff]
  %v52 = vld [vmem:[%s0 + $0x130] sm:$0xff]
  %v53 = vld [vmem:[%s0 + $0x138] sm:$0xff]
  %v54 = vld [vmem:[%s0 + $0x140] sm:$0xff]
  %v55 = vld [vmem:[%s0 + $0x148] sm:$0xff]
  %v56 = vld [vmem:[%s0 + $0x150] sm:$0xff]
  %v57 = vld [vmem:[%s0 + $0x158] sm:$0xff]
  %v58 = vld [vmem:[%s0 + $0x160] sm:$0xff]
  %v59 = vld [vmem:[%s0 + $0x168] sm:$0xff]
  %v60 = vld [vmem:[%s0 + $0x170] sm:$0xff]
  %v61 = vld [vmem:[%s0 + $0x178] sm:$0xff]
  %v62 = vld [vmem:[%s0 + $0x180] sm:$0xff]
  %v63 = vld [vmem:[%s0 + $0x188] sm:$0xff]
  %v64 = vld [vmem:[%s0 + $0x190] sm:$0xff]
  %v65 = vld [vmem:[%s0 + $0x198] sm:$0xff]
  %v66 = vld [vmem:[%s0 + $0x1a0] sm:$0xff]
  %v67 = vld [vmem:[%s0 + $0x1a8] sm:$0xff]
  %v68 = vld [vmem:[%s0 + $0x1b0] sm:$0xff]
  %v69 = vld [vmem:[%s0 + $0x1b8] sm:$0xff]
  %v70 = vld [vmem:[%s0 + $0x1c0] sm:$0xff]
  %v71 = vld [vmem:[%s0 + $0x1c8] sm:$0xff]
  %v72 = vld [vmem:[%s0 + $0x1d0] sm:$0xff]
  %v73 = vld [vmem:[%s0 + $0x1d8] sm:$0xff]
  %v74 = vld [vmem:[%s0 + $0x1e0] sm:$0xff]
  %v75 = vld [vmem:[%s0 + $0x1e8] sm:$0xff]
  %v76 = vld [vmem:[%s0 + $0x1f0] sm:$0xff]
  %v77 = vld [vmem:[%s0 + $0x1f8] sm:$0xff]
  %v78 = vld [vmem:[%s0 + $0x200] sm:$0xff]
  %v79 = vld [vmem:[%s0 + $0x208] sm:$0xff]
  %v80 = vld [vmem:[%s0 + $0x210] sm:$0xff]
  %v81 = vld [vmem:[%s0 + $0x218] sm:$0xff]
  %v82 = vld [vmem:[%s0 + $0x220] sm:$0xff]
  %v83 = vld [vmem:[%s0 + $0x228] sm:$0xff]
  %v84 = vld [vmem:[%s0 + $0x230] sm:$0xff]
  %v85 = vld [vmem:[%s0 + $0x238] sm:$0xff]
  %v86 = vld [vmem:[%s0 + $0x240] sm:$0xff]
  %v87 = vld [vmem:[%s0 + $0x248] sm:$0xff]
  %v88 = vld [vmem:[%s0 + $0x250] sm:$0xff]
  %v89 = vld [vmem:[%s0 + $0x258] sm:$0xff]
  %v90 = vld [vmem:[%s0 + $0x260] sm:$0xff]
  %v91 = vld [vmem:[%s0 + $0x268] sm:$0xff]
  %v92 = vld [vmem:[%s0 + $0x270] sm:$0xff]
  %v93 = vld [vmem:[%s0 + $0x278] sm:$0xff]
  %v94 = vld [vmem:[%s0 + $0x280] sm:$0xff]
  %v95 = vld [vmem:[%s0 + $0x288] sm:$0xff]
  %v96 = vld [vmem:[%s0 + $0x290] sm:$0xff]
  %v97 = vld [vmem:[%s0 + $0x298] sm:$0xff]
  %v98 = vld [vmem:[%s0 + $0x2a0] sm:$0xff]
  %v99 = vld [vmem:[%s0 + $0x2a8] sm:$0xff]
  %v100 = vld [vmem:[%s0 + $0x2b0] sm:$0xff]
  %v101 = vld [vmem:[%s0 + $0x2b8] sm:$0xff]
  %v102 = vld [vmem:[%s0 + $0x2c0] sm:$0xff]
  %v103 = vld [vmem:[%s0 + $0x2c8] sm:$0xff]
  %v104 = vld [vmem:[%s0 + $0x2d0] sm:$0xff]
  %v105 = vld [vmem:[%s0 + $0x2d8] sm:$0xff]
  %v106 = vld [vmem:[%s0 + $0x2e0] sm:$0xff]
  %v107 = vld [vmem:[%s0 + $0x2e8] sm:$0xff]
  %v108 = vld [vmem:[%s0 + $0x2f0] sm:$0xff]
  %v109 = vld [vmem:[%s0 + $0x2f8] sm:$0xff]
  %v110 = vld [vmem:[%s0 + $0x300] sm:$0xff]
  %v111 = vld [vmem:[%s0 + $0x308] sm:$0xff]
  %v112 = vld [vmem:[%s0 + $0x310] sm:$0xff]
  %v113 = vld [vmem:[%s0 + $0x318] sm:$0xff]
  %v114 = vld [vmem:[%s0 + $0x320] sm:$0xff]
  %v115 = vld [vmem:[%s0 + $0x328] sm:$0xff]
  %v116 = vld [vmem:[%s0 + $0x330] sm:$0xff]
  %v117 = vld [vmem:[%s0 + $0x338] sm:$0xff]
  %v118 = vld [vmem:[%s0 + $0x340] sm:$0xff]
  %v119 = vld [vmem:[%s0 + $0x348] sm:$0xff]
  %v120 = vld [vmem:[%s0 + $0x350] sm:$0xff]
  %v121 = vld [vmem:[%s0 + $0x358] sm:$0xff]
  %v122 = vld [vmem:[%s0 + $0x360] sm:$0xff]
  %v123 = vld [vmem:[%s0 + $0x368] sm:$0xff]
  %v124 = vld [vmem:[%s0 + $0x370] sm:$0xff]
  %v125 = vld [vmem:[%s0 + $0x378] sm:$0xff]
  %v126 = vld [vmem:[%s0 + $0x380] sm:$0xff]
  %v127 = vld [vmem:[%s0 + $0x388] sm:$0xff]
  %v128 = vld [vmem:[%s0 + $0x390] sm:$0xff]
  %v129 = vld [vmem:[%s0 + $0x398] sm:$0xff]
  %v130 = vld [vmem:[%s0 + $0x3a0] sm:$0xff]
  %v131 = vld [vmem:[%s0 + $0x3a8] sm:$0xff]
  %v132 = vld [vmem:[%s0 + $0x3b0] sm:$0xff]
  %v133 = vld [vmem:[%s0 + $0x3b8] sm:$0xff]
  %v134 = vld [vmem:[%s0 + $0x3c0] sm:$0xff]
  %v135 = vld [vmem:[%s0 + $0x3c8] sm:$0xff]
  %v136 = vld [vmem:[%s0 + $0x3d0] sm:$0xff]
  %v137 = vld [vmem:[%s0 + $0x3d8] sm:$0xff]
  %v138 = vld [vmem:[%s0 + $0x3e0] sm:$0xff]
  %v139 = vld [vmem:[%s0 + $0x3e8] sm:$0xff]
  %v140 = vld [vmem:[%s0 + $0x3f0] sm:$0xff]
  %v141 = vld [vmem:[%s0 + $0x3f8] sm:$0xff]
  %vm142 = vcmask 523264
  %v143 = vsel %vm142, %v14, 0.0
  %144 = vadd.xlane.f32.xlu0 %v143
  %v145 = vpop.xlane.xlu0 %144
  %v146 = vsel %vm142, %v15, 0.0
  %147 = vadd.xlane.f32.xlu0 %v146
  %v148 = vpop.xlane.xlu0 %147
  %v149 = vsel %vm142, %v16, 0.0
  %150 = vadd.xlane.f32.xlu0 %v149
  %v151 = vpop.xlane.xlu0 %150
  %v152 = vsel %vm142, %v17, 0.0
  %153 = vadd.xlane.f32.xlu0 %v152
  %v154 = vpop.xlane.xlu0 %153
  %v155 = vsel %vm142, %v18, 0.0
  %156 = vadd.xlane.f32.xlu0 %v155
  %v157 = vpop.xlane.xlu0 %156
  %v158 = vsel %vm142, %v19, 0.0
  %159 = vadd.xlane.f32.xlu0 %v158
  %v160 = vpop.xlane.xlu0 %159
  %v161 = vsel %vm142, %v20, 0.0
  %162 = vadd.xlane.f32.xlu0 %v161
  %v163 = vpop.xlane.xlu0 %162
  %v164 = vsel %vm142, %v21, 0.0
  %165 = vadd.xlane.f32.xlu0 %v164
  %v166 = vpop.xlane.xlu0 %165
  %v167 = vsel %vm142, %v22, 0.0
  %168 = vadd.xlane.f32.xlu0 %v167
  %v169 = vpop.xlane.xlu0 %168
  %v170 = vsel %vm142, %v23, 0.0
  %171 = vadd.xlane.f32.xlu0 %v170
  %v172 = vpop.xlane.xlu0 %171
  %v173 = vsel %vm142, %v24, 0.0
  %174 = vadd.xlane.f32.xlu0 %v173
  %v175 = vpop.xlane.xlu0 %174
  %v176 = vsel %vm142, %v25, 0.0
  %177 = vadd.xlane.f32.xlu0 %v176
  %v178 = vpop.xlane.xlu0 %177
  %v179 = vsel %vm142, %v26, 0.0
  %180 = vadd.xlane.f32.xlu0 %v179
  %v181 = vpop.xlane.xlu0 %180
  %v182 = vsel %vm142, %v27, 0.0
  %183 = vadd.xlane.f32.xlu0 %v182
  %v184 = vpop.xlane.xlu0 %183
  %v185 = vsel %vm142, %v28, 0.0
  %186 = vadd.xlane.f32.xlu0 %v185
  %v187 = vpop.xlane.xlu0 %186
  %v188 = vsel %vm142, %v29, 0.0
  %189 = vadd.xlane.f32.xlu0 %v188
  %v190 = vpop.xlane.xlu0 %189
  %v191 = vsel %vm142, %v30, 0.0
  %192 = vadd.xlane.f32.xlu0 %v191
  %v193 = vpop.xlane.xlu0 %192
  %v194 = vsel %vm142, %v31, 0.0
  %195 = vadd.xlane.f32.xlu0 %v194
  %v196 = vpop.xlane.xlu0 %195
  %v197 = vsel %vm142, %v32, 0.0
  %198 = vadd.xlane.f32.xlu0 %v197
  %v199 = vpop.xlane.xlu0 %198
  %v200 = vsel %vm142, %v33, 0.0
  %201 = vadd.xlane.f32.xlu0 %v200
  %v202 = vpop.xlane.xlu0 %201
  %v203 = vsel %vm142, %v34, 0.0
  %204 = vadd.xlane.f32.xlu0 %v203
  %v205 = vpop.xlane.xlu0 %204
  %v206 = vsel %vm142, %v35, 0.0
  %207 = vadd.xlane.f32.xlu0 %v206
  %v208 = vpop.xlane.xlu0 %207
  %v209 = vsel %vm142, %v36, 0.0
  %210 = vadd.xlane.f32.xlu0 %v209
  %v211 = vpop.xlane.xlu0 %210
  %v212 = vsel %vm142, %v37, 0.0
  %213 = vadd.xlane.f32.xlu0 %v212
  %v214 = vpop.xlane.xlu0 %213
  %v215 = vsel %vm142, %v38, 0.0
  %216 = vadd.xlane.f32.xlu0 %v215
  %v217 = vpop.xlane.xlu0 %216
  %v218 = vsel %vm142, %v39, 0.0
  %219 = vadd.xlane.f32.xlu0 %v218
  %v220 = vpop.xlane.xlu0 %219
  %v221 = vsel %vm142, %v40, 0.0
  %222 = vadd.xlane.f32.xlu0 %v221
  %v223 = vpop.xlane.xlu0 %222
  %v224 = vsel %vm142, %v41, 0.0
  %225 = vadd.xlane.f32.xlu0 %v224
  %v226 = vpop.xlane.xlu0 %225
  %v227 = vsel %vm142, %v42, 0.0
  %228 = vadd.xlane.f32.xlu0 %v227
  %v229 = vpop.xlane.xlu0 %228
  %v230 = vsel %vm142, %v43, 0.0
  %231 = vadd.xlane.f32.xlu0 %v230
  %v232 = vpop.xlane.xlu0 %231
  %v233 = vsel %vm142, %v44, 0.0
  %234 = vadd.xlane.f32.xlu0 %v233
  %v235 = vpop.xlane.xlu0 %234
  %v236 = vsel %vm142, %v45, 0.0
  %237 = vadd.xlane.f32.xlu0 %v236
  %v238 = vpop.xlane.xlu0 %237
  %v239 = vsel %vm142, %v46, 0.0
  %240 = vadd.xlane.f32.xlu0 %v239
  %v241 = vpop.xlane.xlu0 %240
  %v242 = vsel %vm142, %v47, 0.0
  %243 = vadd.xlane.f32.xlu0 %v242
  %v244 = vpop.xlane.xlu0 %243
  %v245 = vsel %vm142, %v48, 0.0
  %246 = vadd.xlane.f32.xlu0 %v245
  %v247 = vpop.xlane.xlu0 %246
  %v248 = vsel %vm142, %v49, 0.0
  %249 = vadd.xlane.f32.xlu0 %v248
  %v250 = vpop.xlane.xlu0 %249
  %v251 = vsel %vm142, %v50, 0.0
  %252 = vadd.xlane.f32.xlu0 %v251
  %v253 = vpop.xlane.xlu0 %252
  %v254 = vsel %vm142, %v51, 0.0
  %255 = vadd.xlane.f32.xlu0 %v254
  %v256 = vpop.xlane.xlu0 %255
  %v257 = vsel %vm142, %v52, 0.0
  %258 = vadd.xlane.f32.xlu0 %v257
  %v259 = vpop.xlane.xlu0 %258
  %v260 = vsel %vm142, %v53, 0.0
  %261 = vadd.xlane.f32.xlu0 %v260
  %v262 = vpop.xlane.xlu0 %261
  %v263 = vsel %vm142, %v54, 0.0
  %264 = vadd.xlane.f32.xlu0 %v263
  %v265 = vpop.xlane.xlu0 %264
  %v266 = vsel %vm142, %v55, 0.0
  %267 = vadd.xlane.f32.xlu0 %v266
  %v268 = vpop.xlane.xlu0 %267
  %v269 = vsel %vm142, %v56, 0.0
  %270 = vadd.xlane.f32.xlu0 %v269
  %v271 = vpop.xlane.xlu0 %270
  %v272 = vsel %vm142, %v57, 0.0
  %273 = vadd.xlane.f32.xlu0 %v272
  %v274 = vpop.xlane.xlu0 %273
  %v275 = vsel %vm142, %v58, 0.0
  %276 = vadd.xlane.f32.xlu0 %v275
  %v277 = vpop.xlane.xlu0 %276
  %v278 = vsel %vm142, %v59, 0.0
  %279 = vadd.xlane.f32.xlu0 %v278
  %v280 = vpop.xlane.xlu0 %279
  %v281 = vsel %vm142, %v60, 0.0
  %282 = vadd.xlane.f32.xlu0 %v281
  %v283 = vpop.xlane.xlu0 %282
  %v284 = vsel %vm142, %v61, 0.0
  %285 = vadd.xlane.f32.xlu0 %v284
  %v286 = vpop.xlane.xlu0 %285
  %v287 = vsel %vm142, %v62, 0.0
  %288 = vadd.xlane.f32.xlu0 %v287
  %v289 = vpop.xlane.xlu0 %288
  %v290 = vsel %vm142, %v63, 0.0
  %291 = vadd.xlane.f32.xlu0 %v290
  %v292 = vpop.xlane.xlu0 %291
  %v293 = vsel %vm142, %v64, 0.0
  %294 = vadd.xlane.f32.xlu0 %v293
  %v295 = vpop.xlane.xlu0 %294
  %v296 = vsel %vm142, %v65, 0.0
  %297 = vadd.xlane.f32.xlu0 %v296
  %v298 = vpop.xlane.xlu0 %297
  %v299 = vsel %vm142, %v66, 0.0
  %300 = vadd.xlane.f32.xlu0 %v299
  %v301 = vpop.xlane.xlu0 %300
  %v302 = vsel %vm142, %v67, 0.0
  %303 = vadd.xlane.f32.xlu0 %v302
  %v304 = vpop.xlane.xlu0 %303
  %v305 = vsel %vm142, %v68, 0.0
  %306 = vadd.xlane.f32.xlu0 %v305
  %v307 = vpop.xlane.xlu0 %306
  %v308 = vsel %vm142, %v69, 0.0
  %309 = vadd.xlane.f32.xlu0 %v308
  %v310 = vpop.xlane.xlu0 %309
  %v311 = vsel %vm142, %v70, 0.0
  %312 = vadd.xlane.f32.xlu0 %v311
  %v313 = vpop.xlane.xlu0 %312
  %v314 = vsel %vm142, %v71, 0.0
  %315 = vadd.xlane.f32.xlu0 %v314
  %v316 = vpop.xlane.xlu0 %315
  %v317 = vsel %vm142, %v72, 0.0
  %318 = vadd.xlane.f32.xlu0 %v317
  %v319 = vpop.xlane.xlu0 %318
  %v320 = vsel %vm142, %v73, 0.0
  %321 = vadd.xlane.f32.xlu0 %v320
  %v322 = vpop.xlane.xlu0 %321
  %v323 = vsel %vm142, %v74, 0.0
  %324 = vadd.xlane.f32.xlu0 %v323
  %v325 = vpop.xlane.xlu0 %324
  %v326 = vsel %vm142, %v75, 0.0
  %327 = vadd.xlane.f32.xlu0 %v326
  %v328 = vpop.xlane.xlu0 %327
  %v329 = vsel %vm142, %v76, 0.0
  %330 = vadd.xlane.f32.xlu0 %v329
  %v331 = vpop.xlane.xlu0 %330
  %v332 = vsel %vm142, %v77, 0.0
  %333 = vadd.xlane.f32.xlu0 %v332
  %v334 = vpop.xlane.xlu0 %333
  %v335 = vsel %vm142, %v78, 0.0
  %336 = vadd.xlane.f32.xlu0 %v335
  %v337 = vpop.xlane.xlu0 %336
  %v338 = vsel %vm142, %v79, 0.0
  %339 = vadd.xlane.f32.xlu0 %v338
  %v340 = vpop.xlane.xlu0 %339
  %v341 = vsel %vm142, %v80, 0.0
  %342 = vadd.xlane.f32.xlu0 %v341
  %v343 = vpop.xlane.xlu0 %342
  %v344 = vsel %vm142, %v81, 0.0
  %345 = vadd.xlane.f32.xlu0 %v344
  %v346 = vpop.xlane.xlu0 %345
  %v347 = vsel %vm142, %v82, 0.0
  %348 = vadd.xlane.f32.xlu0 %v347
  %v349 = vpop.xlane.xlu0 %348
  %v350 = vsel %vm142, %v83, 0.0
  %351 = vadd.xlane.f32.xlu0 %v350
  %v352 = vpop.xlane.xlu0 %351
  %v353 = vsel %vm142, %v84, 0.0
  %354 = vadd.xlane.f32.xlu0 %v353
  %v355 = vpop.xlane.xlu0 %354
  %v356 = vsel %vm142, %v85, 0.0
  %357 = vadd.xlane.f32.xlu0 %v356
  %v358 = vpop.xlane.xlu0 %357
  %v359 = vsel %vm142, %v86, 0.0
  %360 = vadd.xlane.f32.xlu0 %v359
  %v361 = vpop.xlane.xlu0 %360
  %v362 = vsel %vm142, %v87, 0.0
  %363 = vadd.xlane.f32.xlu0 %v362
  %v364 = vpop.xlane.xlu0 %363
  %v365 = vsel %vm142, %v88, 0.0
  %366 = vadd.xlane.f32.xlu0 %v365
  %v367 = vpop.xlane.xlu0 %366
  %v368 = vsel %vm142, %v89, 0.0
  %369 = vadd.xlane.f32.xlu0 %v368
  %v370 = vpop.xlane.xlu0 %369
  %v371 = vsel %vm142, %v90, 0.0
  %372 = vadd.xlane.f32.xlu0 %v371
  %v373 = vpop.xlane.xlu0 %372
  %v374 = vsel %vm142, %v91, 0.0
  %375 = vadd.xlane.f32.xlu0 %v374
  %v376 = vpop.xlane.xlu0 %375
  %v377 = vsel %vm142, %v92, 0.0
  %378 = vadd.xlane.f32.xlu0 %v377
  %v379 = vpop.xlane.xlu0 %378
  %v380 = vsel %vm142, %v93, 0.0
  %381 = vadd.xlane.f32.xlu0 %v380
  %v382 = vpop.xlane.xlu0 %381
  %v383 = vsel %vm142, %v94, 0.0
  %384 = vadd.xlane.f32.xlu0 %v383
  %v385 = vpop.xlane.xlu0 %384
  %v386 = vsel %vm142, %v95, 0.0
  %387 = vadd.xlane.f32.xlu0 %v386
  %v388 = vpop.xlane.xlu0 %387
  %v389 = vsel %vm142, %v96, 0.0
  %390 = vadd.xlane.f32.xlu0 %v389
  %v391 = vpop.xlane.xlu0 %390
  %v392 = vsel %vm142, %v97, 0.0
  %393 = vadd.xlane.f32.xlu0 %v392
  %v394 = vpop.xlane.xlu0 %393
  %v395 = vsel %vm142, %v98, 0.0
  %396 = vadd.xlane.f32.xlu0 %v395
  %v397 = vpop.xlane.xlu0 %396
  %v398 = vsel %vm142, %v99, 0.0
  %399 = vadd.xlane.f32.xlu0 %v398
  %v400 = vpop.xlane.xlu0 %399
  %v401 = vsel %vm142, %v100, 0.0
  %402 = vadd.xlane.f32.xlu0 %v401
  %v403 = vpop.xlane.xlu0 %402
  %v404 = vsel %vm142, %v101, 0.0
  %405 = vadd.xlane.f32.xlu0 %v404
  %v406 = vpop.xlane.xlu0 %405
  %v407 = vsel %vm142, %v102, 0.0
  %408 = vadd.xlane.f32.xlu0 %v407
  %v409 = vpop.xlane.xlu0 %408
  %v410 = vsel %vm142, %v103, 0.0
  %411 = vadd.xlane.f32.xlu0 %v410
  %v412 = vpop.xlane.xlu0 %411
  %v413 = vsel %vm142, %v104, 0.0
  %414 = vadd.xlane.f32.xlu0 %v413
  %v415 = vpop.xlane.xlu0 %414
  %v416 = vsel %vm142, %v105, 0.0
  %417 = vadd.xlane.f32.xlu0 %v416
  %v418 = vpop.xlane.xlu0 %417
  %v419 = vsel %vm142, %v106, 0.0
  %420 = vadd.xlane.f32.xlu0 %v419
  %v421 = vpop.xlane.xlu0 %420
  %v422 = vsel %vm142, %v107, 0.0
  %423 = vadd.xlane.f32.xlu0 %v422
  %v424 = vpop.xlane.xlu0 %423
  %v425 = vsel %vm142, %v108, 0.0
  %426 = vadd.xlane.f32.xlu0 %v425
  %v427 = vpop.xlane.xlu0 %426
  %v428 = vsel %vm142, %v109, 0.0
  %429 = vadd.xlane.f32.xlu0 %v428
  %v430 = vpop.xlane.xlu0 %429
  %v431 = vsel %vm142, %v110, 0.0
  %432 = vadd.xlane.f32.xlu0 %v431
  %v433 = vpop.xlane.xlu0 %432
  %v434 = vsel %vm142, %v111, 0.0
  %435 = vadd.xlane.f32.xlu0 %v434
  %v436 = vpop.xlane.xlu0 %435
  %v437 = vsel %vm142, %v112, 0.0
  %438 = vadd.xlane.f32.xlu0 %v437
  %v439 = vpop.xlane.xlu0 %438
  %v440 = vsel %vm142, %v113, 0.0
  %441 = vadd.xlane.f32.xlu0 %v440
  %v442 = vpop.xlane.xlu0 %441
  %v443 = vsel %vm142, %v114, 0.0
  %444 = vadd.xlane.f32.xlu0 %v443
  %v445 = vpop.xlane.xlu0 %444
  %v446 = vsel %vm142, %v115, 0.0
  %447 = vadd.xlane.f32.xlu0 %v446
  %v448 = vpop.xlane.xlu0 %447
  %v449 = vsel %vm142, %v116, 0.0
  %450 = vadd.xlane.f32.xlu0 %v449
  %v451 = vpop.xlane.xlu0 %450
  %v452 = vsel %vm142, %v117, 0.0
  %453 = vadd.xlane.f32.xlu0 %v452
  %v454 = vpop.xlane.xlu0 %453
  %v455 = vsel %vm142, %v118, 0.0
  %456 = vadd.xlane.f32.xlu0 %v455
  %v457 = vpop.xlane.xlu0 %456
  %v458 = vsel %vm142, %v119, 0.0
  %459 = vadd.xlane.f32.xlu0 %v458
  %v460 = vpop.xlane.xlu0 %459
  %v461 = vsel %vm142, %v120, 0.0
  %462 = vadd.xlane.f32.xlu0 %v461
  %v463 = vpop.xlane.xlu0 %462
  %v464 = vsel %vm142, %v121, 0.0
  %465 = vadd.xlane.f32.xlu0 %v464
  %v466 = vpop.xlane.xlu0 %465
  %v467 = vsel %vm142, %v122, 0.0
  %468 = vadd.xlane.f32.xlu0 %v467
  %v469 = vpop.xlane.xlu0 %468
  %v470 = vsel %vm142, %v123, 0.0
  %471 = vadd.xlane.f32.xlu0 %v470
  %v472 = vpop.xlane.xlu0 %471
  %v473 = vsel %vm142, %v124, 0.0
  %474 = vadd.xlane.f32.xlu0 %v473
  %v475 = vpop.xlane.xlu0 %474
  %v476 = vsel %vm142, %v125, 0.0
  %477 = vadd.xlane.f32.xlu0 %v476
  %v478 = vpop.xlane.xlu0 %477
  %v479 = vsel %vm142, %v126, 0.0
  %480 = vadd.xlane.f32.xlu0 %v479
  %v481 = vpop.xlane.xlu0 %480
  %v482 = vsel %vm142, %v127, 0.0
  %483 = vadd.xlane.f32.xlu0 %v482
  %v484 = vpop.xlane.xlu0 %483
  %v485 = vsel %vm142, %v128, 0.0
  %486 = vadd.xlane.f32.xlu0 %v485
  %v487 = vpop.xlane.xlu0 %486
  %v488 = vsel %vm142, %v129, 0.0
  %489 = vadd.xlane.f32.xlu0 %v488
  %v490 = vpop.xlane.xlu0 %489
  %v491 = vsel %vm142, %v130, 0.0
  %492 = vadd.xlane.f32.xlu0 %v491
  %v493 = vpop.xlane.xlu0 %492
  %v494 = vsel %vm142, %v131, 0.0
  %495 = vadd.xlane.f32.xlu0 %v494
  %v496 = vpop.xlane.xlu0 %495
  %v497 = vsel %vm142, %v132, 0.0
  %498 = vadd.xlane.f32.xlu0 %v497
  %v499 = vpop.xlane.xlu0 %498
  %v500 = vsel %vm142, %v133, 0.0
  %501 = vadd.xlane.f32.xlu0 %v500
  %v502 = vpop.xlane.xlu0 %501
  %v503 = vsel %vm142, %v134, 0.0
  %504 = vadd.xlane.f32.xlu0 %v503
  %v505 = vpop.xlane.xlu0 %504
  %v506 = vsel %vm142, %v135, 0.0
  %507 = vadd.xlane.f32.xlu0 %v506
  %v508 = vpop.xlane.xlu0 %507
  %v509 = vsel %vm142, %v136, 0.0
  %510 = vadd.xlane.f32.xlu0 %v509
  %v511 = vpop.xlane.xlu0 %510
  %v512 = vsel %vm142, %v137, 0.0
  %513 = vadd.xlane.f32.xlu0 %v512
  %v514 = vpop.xlane.xlu0 %513
  %v515 = vsel %vm142, %v138, 0.0
  %516 = vadd.xlane.f32.xlu0 %v515
  %v517 = vpop.xlane.xlu0 %516
  %v518 = vsel %vm142, %v139, 0.0
  %519 = vadd.xlane.f32.xlu0 %v518
  %v520 = vpop.xlane.xlu0 %519
  %v521 = vsel %vm142, %v140, 0.0
  %522 = vadd.xlane.f32.xlu0 %v521
  %v523 = vpop.xlane.xlu0 %522
  %v524 = vsel %vm142, %v141, 0.0
  %525 = vadd.xlane.f32.xlu0 %v524
  %v526 = vpop.xlane.xlu0 %525
  %v527 = vld [vmem:[%s1] sm:$0xff]
  %v528 = vld [vmem:[%s1 + $0x8] sm:$0xff]
  %v529 = vld [vmem:[%s1 + $0x10] sm:$0xff]
  %v530 = vld [vmem:[%s1 + $0x18] sm:$0xff]
  %v531 = vld [vmem:[%s1 + $0x20] sm:$0xff]
  %v532 = vld [vmem:[%s1 + $0x28] sm:$0xff]
  %v533 = vld [vmem:[%s1 + $0x30] sm:$0xff]
  %v534 = vld [vmem:[%s1 + $0x38] sm:$0xff]
  %v535 = vld [vmem:[%s1 + $0x40] sm:$0xff]
  %v536 = vld [vmem:[%s1 + $0x48] sm:$0xff]
  %v537 = vld [vmem:[%s1 + $0x50] sm:$0xff]
  %v538 = vld [vmem:[%s1 + $0x58] sm:$0xff]
  %v539 = vld [vmem:[%s1 + $0x60] sm:$0xff]
  %v540 = vld [vmem:[%s1 + $0x68] sm:$0xff]
  %v541 = vld [vmem:[%s1 + $0x70] sm:$0xff]
  %v542 = vld [vmem:[%s1 + $0x78] sm:$0xff]
  %v543 = vld [vmem:[%s2] sm:$0x1]
  %v545 = vperm.slane %v543, 0
  %v675 = vlaneseq
  %v676 = vand.u32 %v675, 127
  %v677 = vperm.slane %v145, %v676
  %v678 = vadd.s32 %v676, 4294967288
  %v679 = vperm.slane %v148, %v678
  %vm680 = vcmask 130112
  %v681 = vsel %vm680, %v679, %v677
  %v682 = vadd.s32 %v676, 4294967280
  %v683 = vperm.slane %v151, %v682
  %vm684 = vcmask 195712
  %v685 = vsel %vm684, %v683, %v681
  %v686 = vadd.s32 %v676, 4294967272
  %v687 = vperm.slane %v154, %v686
  %vm688 = vcmask 261312
  %v689 = vsel %vm688, %v687, %v685
  %v690 = vadd.s32 %v676, 4294967264
  %v691 = vperm.slane %v157, %v690
  %vm692 = vcmask 326912
  %v693 = vsel %vm692, %v691, %v689
  %v694 = vadd.s32 %v676, 4294967256
  %v695 = vperm.slane %v160, %v694
  %vm696 = vcmask 392512
  %v697 = vsel %vm696, %v695, %v693
  %v698 = vadd.s32 %v676, 4294967248
  %v699 = vperm.slane %v163, %v698
  %vm700 = vcmask 458112
  %v701 = vsel %vm700, %v699, %v697
  %v702 = vadd.s32 %v676, 4294967240
  %v703 = vperm.slane %v166, %v702
  %vm704 = vcmask 523712
  %v705 = vsel %vm704, %v703, %v701
  %v706 = vadd.s32 %v676, 4294967232
  %v707 = vperm.slane %v169, %v706
  %vm708 = vcmask 589312
  %v709 = vsel %vm708, %v707, %v705
  %v710 = vadd.s32 %v676, 4294967224
  %v711 = vperm.slane %v172, %v710
  %vm712 = vcmask 654912
  %v713 = vsel %vm712, %v711, %v709
  %v714 = vadd.s32 %v676, 4294967216
  %v715 = vperm.slane %v175, %v714
  %vm716 = vcmask 720512
  %v717 = vsel %vm716, %v715, %v713
  %v718 = vadd.s32 %v676, 4294967208
  %v719 = vperm.slane %v178, %v718
  %vm720 = vcmask 786112
  %v721 = vsel %vm720, %v719, %v717
  %v722 = vadd.s32 %v676, 4294967200
  %v723 = vperm.slane %v181, %v722
  %vm724 = vcmask 851712
  %v725 = vsel %vm724, %v723, %v721
  %v726 = vadd.s32 %v676, 4294967192
  %v727 = vperm.slane %v184, %v726
  %vm728 = vcmask 917312
  %v729 = vsel %vm728, %v727, %v725
  %v730 = vadd.s32 %v676, 4294967184
  %v731 = vperm.slane %v187, %v730
  %vm732 = vcmask 982912
  %v733 = vsel %vm732, %v731, %v729
  %v734 = vadd.s32 %v676, 4294967176
  %v735 = vperm.slane %v190, %v734
  %vm736 = vcmask 1048512
  %v737 = vsel %vm736, %v735, %v733
  %v738 = vperm.slane %v193, %v676
  %v739 = vperm.slane %v196, %v678
  %v740 = vsel %vm680, %v739, %v738
  %v741 = vperm.slane %v199, %v682
  %v742 = vsel %vm684, %v741, %v740
  %v743 = vperm.slane %v202, %v686
  %v744 = vsel %vm688, %v743, %v742
  %v745 = vperm.slane %v205, %v690
  %v746 = vsel %vm692, %v745, %v744
  %v747 = vperm.slane %v208, %v694
  %v748 = vsel %vm696, %v747, %v746
  %v749 = vperm.slane %v211, %v698
  %v750 = vsel %vm700, %v749, %v748
  %v751 = vperm.slane %v214, %v702
  %v752 = vsel %vm704, %v751, %v750
  %v753 = vperm.slane %v217, %v706
  %v754 = vsel %vm708, %v753, %v752
  %v755 = vperm.slane %v220, %v710
  %v756 = vsel %vm712, %v755, %v754
  %v757 = vperm.slane %v223, %v714
  %v758 = vsel %vm716, %v757, %v756
  %v759 = vperm.slane %v226, %v718
  %v760 = vsel %vm720, %v759, %v758
  %v761 = vperm.slane %v229, %v722
  %v762 = vsel %vm724, %v761, %v760
  %v763 = vperm.slane %v232, %v726
  %v764 = vsel %vm728, %v763, %v762
  %v765 = vperm.slane %v235, %v730
  %v766 = vsel %vm732, %v765, %v764
  %v767 = vperm.slane %v238, %v734
  %v768 = vsel %vm736, %v767, %v766
  %v769 = vperm.slane %v241, %v676
  %v770 = vperm.slane %v244, %v678
  %v771 = vsel %vm680, %v770, %v769
  %v772 = vperm.slane %v247, %v682
  %v773 = vsel %vm684, %v772, %v771
  %v774 = vperm.slane %v250, %v686
  %v775 = vsel %vm688, %v774, %v773
  %v776 = vperm.slane %v253, %v690
  %v777 = vsel %vm692, %v776, %v775
  %v778 = vperm.slane %v256, %v694
  %v779 = vsel %vm696, %v778, %v777
  %v780 = vperm.slane %v259, %v698
  %v781 = vsel %vm700, %v780, %v779
  %v782 = vperm.slane %v262, %v702
  %v783 = vsel %vm704, %v782, %v781
  %v784 = vperm.slane %v265, %v706
  %v785 = vsel %vm708, %v784, %v783
  %v786 = vperm.slane %v268, %v710
  %v787 = vsel %vm712, %v786, %v785
  %v788 = vperm.slane %v271, %v714
  %v789 = vsel %vm716, %v788, %v787
  %v790 = vperm.slane %v274, %v718
  %v791 = vsel %vm720, %v790, %v789
  %v792 = vperm.slane %v277, %v722
  %v793 = vsel %vm724, %v792, %v791
  %v794 = vperm.slane %v280, %v726
  %v795 = vsel %vm728, %v794, %v793
  %v796 = vperm.slane %v283, %v730
  %v797 = vsel %vm732, %v796, %v795
  %v798 = vperm.slane %v286, %v734
  %v799 = vsel %vm736, %v798, %v797
  %v800 = vperm.slane %v289, %v676
  %v801 = vperm.slane %v292, %v678
  %v802 = vsel %vm680, %v801, %v800
  %v803 = vperm.slane %v295, %v682
  %v804 = vsel %vm684, %v803, %v802
  %v805 = vperm.slane %v298, %v686
  %v806 = vsel %vm688, %v805, %v804
  %v807 = vperm.slane %v301, %v690
  %v808 = vsel %vm692, %v807, %v806
  %v809 = vperm.slane %v304, %v694
  %v810 = vsel %vm696, %v809, %v808
  %v811 = vperm.slane %v307, %v698
  %v812 = vsel %vm700, %v811, %v810
  %v813 = vperm.slane %v310, %v702
  %v814 = vsel %vm704, %v813, %v812
  %v815 = vperm.slane %v313, %v706
  %v816 = vsel %vm708, %v815, %v814
  %v817 = vperm.slane %v316, %v710
  %v818 = vsel %vm712, %v817, %v816
  %v819 = vperm.slane %v319, %v714
  %v820 = vsel %vm716, %v819, %v818
  %v821 = vperm.slane %v322, %v718
  %v822 = vsel %vm720, %v821, %v820
  %v823 = vperm.slane %v325, %v722
  %v824 = vsel %vm724, %v823, %v822
  %v825 = vperm.slane %v328, %v726
  %v826 = vsel %vm728, %v825, %v824
  %v827 = vperm.slane %v331, %v730
  %v828 = vsel %vm732, %v827, %v826
  %v829 = vperm.slane %v334, %v734
  %v830 = vsel %vm736, %v829, %v828
  %v831 = vperm.slane %v337, %v676
  %v832 = vperm.slane %v340, %v678
  %v833 = vsel %vm680, %v832, %v831
  %v834 = vperm.slane %v343, %v682
  %v835 = vsel %vm684, %v834, %v833
  %v836 = vperm.slane %v346, %v686
  %v837 = vsel %vm688, %v836, %v835
  %v838 = vperm.slane %v349, %v690
  %v839 = vsel %vm692, %v838, %v837
  %v840 = vperm.slane %v352, %v694
  %v841 = vsel %vm696, %v840, %v839
  %v842 = vperm.slane %v355, %v698
  %v843 = vsel %vm700, %v842, %v841
  %v844 = vperm.slane %v358, %v702
  %v845 = vsel %vm704, %v844, %v843
  %v846 = vperm.slane %v361, %v706
  %v847 = vsel %vm708, %v846, %v845
  %v848 = vperm.slane %v364, %v710
  %v849 = vsel %vm712, %v848, %v847
  %v850 = vperm.slane %v367, %v714
  %v851 = vsel %vm716, %v850, %v849
  %v852 = vperm.slane %v370, %v718
  %v853 = vsel %vm720, %v852, %v851
  %v854 = vperm.slane %v373, %v722
  %v855 = vsel %vm724, %v854, %v853
  %v856 = vperm.slane %v376, %v726
  %v857 = vsel %vm728, %v856, %v855
  %v858 = vperm.slane %v379, %v730
  %v859 = vsel %vm732, %v858, %v857
  %v860 = vperm.slane %v382, %v734
  %v861 = vsel %vm736, %v860, %v859
  %v862 = vperm.slane %v385, %v676
  %v863 = vperm.slane %v388, %v678
  %v864 = vsel %vm680, %v863, %v862
  %v865 = vperm.slane %v391, %v682
  %v866 = vsel %vm684, %v865, %v864
  %v867 = vperm.slane %v394, %v686
  %v868 = vsel %vm688, %v867, %v866
  %v869 = vperm.slane %v397, %v690
  %v870 = vsel %vm692, %v869, %v868
  %v871 = vperm.slane %v400, %v694
  %v872 = vsel %vm696, %v871, %v870
  %v873 = vperm.slane %v403, %v698
  %v874 = vsel %vm700, %v873, %v872
  %v875 = vperm.slane %v406, %v702
  %v876 = vsel %vm704, %v875, %v874
  %v877 = vperm.slane %v409, %v706
  %v878 = vsel %vm708, %v877, %v876
  %v879 = vperm.slane %v412, %v710
  %v880 = vsel %vm712, %v879, %v878
  %v881 = vperm.slane %v415, %v714
  %v882 = vsel %vm716, %v881, %v880
  %v883 = vperm.slane %v418, %v718
  %v884 = vsel %vm720, %v883, %v882
  %v885 = vperm.slane %v421, %v722
  %v886 = vsel %vm724, %v885, %v884
  %v887 = vperm.slane %v424, %v726
  %v888 = vsel %vm728, %v887, %v886
  %v889 = vperm.slane %v427, %v730
  %v890 = vsel %vm732, %v889, %v888
  %v891 = vperm.slane %v430, %v734
  %v892 = vsel %vm736, %v891, %v890
  %v893 = vperm.slane %v433, %v676
  %v894 = vperm.slane %v436, %v678
  %v895 = vsel %vm680, %v894, %v893
  %v896 = vperm.slane %v439, %v682
  %v897 = vsel %vm684, %v896, %v895
  %v898 = vperm.slane %v442, %v686
  %v899 = vsel %vm688, %v898, %v897
  %v900 = vperm.slane %v445, %v690
  %v901 = vsel %vm692, %v900, %v899
  %v902 = vperm.slane %v448, %v694
  %v903 = vsel %vm696, %v902, %v901
  %v904 = vperm.slane %v451, %v698
  %v905 = vsel %vm700, %v904, %v903
  %v906 = vperm.slane %v454, %v702
  %v907 = vsel %vm704, %v906, %v905
  %v908 = vperm.slane %v457, %v706
  %v909 = vsel %vm708, %v908, %v907
  %v910 = vperm.slane %v460, %v710
  %v911 = vsel %vm712, %v910, %v909
  %v912 = vperm.slane %v463, %v714
  %v913 = vsel %vm716, %v912, %v911
  %v914 = vperm.slane %v466, %v718
  %v915 = vsel %vm720, %v914, %v913
  %v916 = vperm.slane %v469, %v722
  %v917 = vsel %vm724, %v916, %v915
  %v918 = vperm.slane %v472, %v726
  %v919 = vsel %vm728, %v918, %v917
  %v920 = vperm.slane %v475, %v730
  %v921 = vsel %vm732, %v920, %v919
  %v922 = vperm.slane %v478, %v734
  %v923 = vsel %vm736, %v922, %v921
  %v924 = vperm.slane %v481, %v676
  %v925 = vperm.slane %v484, %v678
  %v926 = vsel %vm680, %v925, %v924
  %v927 = vperm.slane %v487, %v682
  %v928 = vsel %vm684, %v927, %v926
  %v929 = vperm.slane %v490, %v686
  %v930 = vsel %vm688, %v929, %v928
  %v931 = vperm.slane %v493, %v690
  %v932 = vsel %vm692, %v931, %v930
  %v933 = vperm.slane %v496, %v694
  %v934 = vsel %vm696, %v933, %v932
  %v935 = vperm.slane %v499, %v698
  %v936 = vsel %vm700, %v935, %v934
  %v937 = vperm.slane %v502, %v702
  %v938 = vsel %vm704, %v937, %v936
  %v939 = vperm.slane %v505, %v706
  %v940 = vsel %vm708, %v939, %v938
  %v941 = vperm.slane %v508, %v710
  %v942 = vsel %vm712, %v941, %v940
  %v943 = vperm.slane %v511, %v714
  %v944 = vsel %vm716, %v943, %v942
  %v945 = vperm.slane %v514, %v718
  %v946 = vsel %vm720, %v945, %v944
  %v947 = vperm.slane %v517, %v722
  %v948 = vsel %vm724, %v947, %v946
  %v949 = vperm.slane %v520, %v726
  %v950 = vsel %vm728, %v949, %v948
  %v951 = vperm.slane %v523, %v730
  %v952 = vsel %vm732, %v951, %v950
  %v953 = vperm.slane %v526, %v734
  %v954 = vsel %vm736, %v953, %v952
  %vm955 = vcmask 1041409
  %v956 = vsel %vm955, %v768, %v737
  %vm957 = vcmask 1042434
  %v958 = vsel %vm957, %v799, %v956
  %vm959 = vcmask 1043459
  %v960 = vsel %vm959, %v830, %v958
  %vm961 = vcmask 1044484
  %v962 = vsel %vm961, %v861, %v960
  %vm963 = vcmask 1045509
  %v964 = vsel %vm963, %v892, %v962
  %vm965 = vcmask 1046534
  %v966 = vsel %vm965, %v923, %v964
  %vm967 = vcmask 1047559
  %v968 = vsel %vm967, %v954, %v966
  %970 = vmatpush.msra.mxu0 %v542
  %971 = vmatpush.msra.mxu0 %v541
  %972 = vmatpush.msra.mxu0 %v540
  %973 = vmatpush.msra.mxu0 %v539
  %974 = vmatpush.msra.mxu0 %v538
  %975 = vmatpush.msra.mxu0 %v537
  %976 = vmatpush.msra.mxu0 %v536
  %977 = vmatpush.msra.mxu0 %v535
  %978 = vmatpush.msra.mxu0 %v534
  %979 = vmatpush.msra.mxu0 %v533
  %980 = vmatpush.msra.mxu0 %v532
  %981 = vmatpush.msra.mxu0 %v531
  %982 = vmatpush.msra.mxu0 %v530
  %983 = vmatpush.msra.mxu0 %v529
  %984 = vmatpush.msra.mxu0 %v528
  %985 = vmatpush.msra.mxu0 %v527
  %986 = vmatmul.f32.gmra.mxu0 %v968
  %v987 = vpop.f32.mrf.mxu0
  %v988 = vadd.f32 %v545, %v987
  %989 = vdwg.mxu0
  %990 = vst [vmem:[%s3] sm:$0xff] %v988
  // Predicated region
  $region14: #{ursonet_head_forward.1} parent=0 // pred_check
    _
  $region15: #{ursonet_head_forward.1} parent=0 // pred_check_branch
    %992 = sbr.rel (0) target = $region17
  $region16: #{ursonet_head_forward.1} parent=0 // pred_region
    _
  $region17: #{ursonet_head_forward.1} parent=0 // pred_fallthru
    _
  // Predicated region
  $region18: #{ursonet_head_forward.1} parent=0 // pred_check
    _
  $region19: #{ursonet_head_forward.1} parent=0 // pred_check_branch
    %994 = sbr.rel (0) target = $region21
  $region20: #{ursonet_head_forward.1} parent=0 // pred_region
    _
  $region21: #{ursonet_head_forward.1} parent=0 // pred_fallthru
    _

</llo_original>
